<compile_context>
chip_gen: v6e
topology: v6e:2x2x1
jax: 0.10.0
libtpu: 0.0.40
codegen_flags: <defaults>
</compile_context>

<pallas_src>
import jax
import jax.numpy as jnp
from jax.experimental import pallas as pl
from jax.experimental.pallas import tpu as pltpu


def _swish_kernel(x_ref, o_ref):
    # y = x * sigmoid(x); sigmoid via tanh = single EUP transcendental per
    # element (exp + f32 divide would crowd the EUP/VALU slots on v7x).
    # f32 intermediate matches torch.sigmoid numerics for sub-f32 dtypes.
    xf = x_ref[...].astype(jnp.float32)
    sig = 0.5 * jnp.tanh(0.5 * xf) + 0.5
    o_ref[...] = (xf * sig).astype(o_ref.dtype)


# Widest lane width first -> lane-dense, unmasked full-width stores + long DMA bursts.
_LANE_CHOICES = (2048, 1024, 512, 256, 128)
# Want >= 4 grid steps when the tensor allows it: >= 2 steps per TensorCore on
# v7x (dimension_semantics=("parallel",)) and real double-buffer overlap.
_MIN_GRID_STEPS = 4
# Conservative block (in elements) for the ragged fallback path; multiple of
# 8*128 so non-final blocks are perfectly tiled, small enough that even a
# sublane-padded VMEM layout stays far below every chip's scoped-VMEM limit.
_RAGGED_BLOCK_ELEMS = 64 * 1024


def _round_up(a, m):
    return ((a + m - 1) // m) * m


def _chip_tuning():
    """Returns (block_bytes, vmem_limit_bytes or None) for the local chip."""
    kind = ""
    try:
        kind = jax.devices()[0].device_kind.lower()
    except Exception:  # pragma: no cover - CPU/interpret fallback
        pass
    if "7x" in kind or "v7" in kind:
        # v7x: ~3.2 TB/s per-TC HBM; 8 MiB blocks amortize the ~0.35-0.6 us
        # per-step overhead. 2-in + 2-out double buffers = 32 MiB live, so
        # raise the scoped-VMEM limit (64 MiB physical) with headroom.
        return 8 * 1024 * 1024, 48 * 1024 * 1024
    # v5e / v6e: 2 MiB blocks are already on the measured ~85% HBM-roofline
    # plateau and the 4 x 2 MiB double buffers fit the 16 MiB v5e scoped default.
    return 2 * 1024 * 1024, None


def swish(x, donate_input=False):
    """Elementwise x * sigmoid(x) for any shape; preserves input dtype.

    donate_input=True adds input_output_aliases={0: 0} so the output reuses the
    input HBM buffer when the caller donates x (halves peak HBM footprint).
    """
    orig_shape = x.shape
    dtype = x.dtype
    n = x.size
    if n == 0:
        return x

    block_bytes, vmem_limit = _chip_tuning()
    itemsize = jnp.dtype(dtype).itemsize
    block_elems = max(1024, block_bytes // itemsize)  # byte-based: dtype-independent block size

    cost = pl.CostEstimate(
        flops=4 * n,
        transcendentals=n,
        bytes_accessed=2 * n * itemsize,
    )
    cp_kwargs = dict(
        # No-op on v5e/v6e (1 TC); shards the grid across both TCs on v7x.
        dimension_semantics=("parallel",),
    )
    if vmem_limit is not None:
        cp_kwargs["vmem_limit_bytes"] = vmem_limit

    call_kwargs = dict(
        compiler_params=pltpu.CompilerParams(**cp_kwargs),
        cost_estimate=cost,
    )
    if donate_input:
        call_kwargs["input_output_aliases"] = {0: 0}

    x_flat = jnp.ravel(x)
    lanes = next((w for w in _LANE_CHOICES if n % w == 0), None)

    if lanes is not None:
        # ---- Main path: lane-dense 2-D slab, zero-copy reshape. -------------
        n_rows = n // lanes
        max_tile_rows = max(8, (block_elems // lanes) // 8 * 8)
        if n_rows > max_tile_rows:
            tile_rows = max_tile_rows
        else:
            # Medium tensor: split into >= _MIN_GRID_STEPS blocks (multiple of
            # 8 rows) instead of one giant block, so both v7x TCs get work and
            # the DMA pipeline overlaps. Ragged final row-block is masked.
            steps = min(_MIN_GRID_STEPS, n_rows // 8)
            if steps >= 2:
                tile_rows = _round_up(pl.cdiv(n_rows, steps), 8)
            else:
                tile_rows = n_rows  # tiny tensor: single full-extent block

        x2d = x_flat.reshape(n_rows, lanes)
        # NOTE: pipeline_mode=pl.Buffered(3) on the input spec is a possible
        # low-priority sweep; default double-buffering is within ~2% measured.
        out2d = pl.pallas_call(
            _swish_kernel,
            out_shape=jax.ShapeDtypeStruct((n_rows, lanes), dtype),
            grid=(pl.cdiv(n_rows, tile_rows),),
            in_specs=[pl.BlockSpec((tile_rows, lanes), lambda i: (i, 0))],
            out_specs=pl.BlockSpec((tile_rows, lanes), lambda i: (i, 0)),
            **call_kwargs,
        )(x2d)
        return out2d.reshape(orig_shape)

    # ---- Ragged path: n not a multiple of 128. -----------------------------
    # Stream the un-padded data directly and let Pallas mask the ragged final
    # block: single HBM read + write pass (no jnp.pad / output slice, which
    # tripled HBM traffic). Masked-out lanes of the final block may compute on
    # garbage but are never stored, and swish never traps.
    x2d = x_flat.reshape(1, n)
    blk = _RAGGED_BLOCK_ELEMS
    if blk >= n:
        blk = n  # single full-extent block (always layout-legal)
    out2d = pl.pallas_call(
        _swish_kernel,
        out_shape=jax.ShapeDtypeStruct((1, n), dtype),
        grid=(pl.cdiv(n, blk),),
        in_specs=[pl.BlockSpec((1, blk), lambda i: (0, i))],
        out_specs=pl.BlockSpec((1, blk), lambda i: (0, i)),
        **call_kwargs,
    )(x2d)
    return out2d.reshape(orig_shape)


if __name__ == "__main__":
    key = jax.random.PRNGKey(0)

    # NCHW input, matching the PyTorch module's typical usage.
    x = jax.random.normal(key, (2, 4, 16, 16), dtype=jnp.float32)
    y = jax.block_until_ready(swish(x))
    y_ref = x * jax.nn.sigmoid(x)
    assert y.shape == x.shape and y.dtype == x.dtype
    assert jnp.allclose(y, y_ref, atol=1e-5, rtol=1e-5)

    # Ragged path (element count not a multiple of 128): no pad / slice now.
    x2 = jax.random.normal(jax.random.PRNGKey(1), (3, 5, 7), dtype=jnp.float32)
    y2 = jax.block_until_ready(swish(x2))
    assert y2.shape == x2.shape and y2.dtype == x2.dtype
    assert jnp.allclose(y2, x2 * jax.nn.sigmoid(x2), atol=1e-5, rtol=1e-5)

    # bf16 input (byte-based block sizing) + donated/aliased HBM buffer.
    x3 = jax.random.normal(jax.random.PRNGKey(2), (4, 8, 128), dtype=jnp.bfloat16)
    x3f = x3.astype(jnp.float32)
    y3_ref = (x3f * jax.nn.sigmoid(x3f)).astype(jnp.bfloat16)
    swish_donated = jax.jit(lambda a: swish(a, donate_input=True), donate_argnums=0)
    y3 = jax.block_until_ready(swish_donated(x3))
    assert y3.shape == x3.shape and y3.dtype == x3.dtype
    assert jnp.allclose(y3.astype(jnp.float32), y3_ref.astype(jnp.float32),
                        atol=2e-2, rtol=2e-2)

    print("KERNEL_OK")
</pallas_src>

<mosaic_0001>
module attributes {stable_mosaic.version = 11 : i64} {
  func.func @_swish_kernel(%arg0: i32, %arg1: memref<1x2048xf32, #tpu.memory_space<vmem>>, %arg2: memref<1x2048xf32, #tpu.memory_space<vmem>>) attributes {dimension_semantics = [#tpu.dimension_semantics<parallel>], iteration_bounds = array<i64: 1>, scalar_prefetch = 0 : i64, scratch_operands = 0 : i64, tpu.core_type = #tpu.core_type<tc>, window_params = [{transform_indices = @transform_0, window_bounds = array<i64: 1, 2048>}, {transform_indices = @transform_1, window_bounds = array<i64: 1, 2048>}]} {
    %c0 = arith.constant 0 : index
    %c0_0 = arith.constant 0 : index
    %0 = vector.load %arg1[%c0, %c0_0] : memref<1x2048xf32, #tpu.memory_space<vmem>>, vector<1x2048xf32>
    %cst = arith.constant 5.000000e-01 : f32
    %1 = vector.broadcast %cst : f32 to vector<1x2048xf32>
    %2 = arith.mulf %1, %0 : vector<1x2048xf32>
    %3 = math.tanh %2 : vector<1x2048xf32>
    %cst_1 = arith.constant 5.000000e-01 : f32
    %4 = vector.broadcast %cst_1 : f32 to vector<1x2048xf32>
    %5 = arith.mulf %4, %3 : vector<1x2048xf32>
    %cst_2 = arith.constant 5.000000e-01 : f32
    %6 = vector.broadcast %cst_2 : f32 to vector<1x2048xf32>
    %7 = arith.addf %5, %6 : vector<1x2048xf32>
    %8 = arith.mulf %0, %7 : vector<1x2048xf32>
    %c0_3 = arith.constant 0 : index
    %c0_4 = arith.constant 0 : index
    %9 = vector.load %arg2[%c0_3, %c0_4] : memref<1x2048xf32, #tpu.memory_space<vmem>>, vector<1x2048xf32>
    tpu.vector_store %arg2[%c0_3, %c0_4], %8 {strides = array<i32>} : memref<1x2048xf32, #tpu.memory_space<vmem>>, vector<1x2048xf32>,
    return
  }
  func.func @transform_0(%arg0: i32) -> (i32, i32) {
    %c0_i32 = arith.constant 0 : i32
    %c0_i32_0 = arith.constant 0 : i32
    return %arg0, %c0_i32 : i32, i32
  }
  func.func @transform_1(%arg0: i32) -> (i32, i32) {
    %c0_i32 = arith.constant 0 : i32
    %c0_i32_0 = arith.constant 0 : i32
    return %arg0, %c0_i32 : i32, i32
  }
}

</mosaic_0001>

<llo_original>
// kernel: tpu_custom_call.1
$region0: #{tpu_custom_call.1}
  #allocation0 [shape = 'u32[]', space=smem, size = 0x4, offset = 0x4, fixed_abs, tag = 'smem constant byte address 0x4 - core index']
  #allocation1 [shape = 'u32[144,128]{1,0:T(1,128)}', space=vmem, size = 0x12000, scoped, tag = 'internal scratch']
  %s0 = inlined_call_operand.hbm [shape: f32[1,2048], index: 0, kind: input, shape index: {}]
  %s1 = inlined_call_operand.hbm [shape: f32[1,2048], index: 1, kind: output, shape index: {}]
  %s2 = sld [smem:[#allocation0]]
  $region18: #{tpu_custom_call.1} parent=0
    _
  %s4 = ssub.s32 1, %s2
  %s5 = scalar_select 0, %s4, %s2
  $region1: #{tpu_custom_call.1} parent=0
    #allocation2 [shape = 'u8[8192]{0}', space=vmem, size = 0x2000, scoped, tag = 'input window, operand 0, single buffered']
    #allocation3 [shape = 's32[1]{0}', space=sflag, size = 0x4, scoped, tag = 'scoped memory for tpu_custom_call.1']
    #allocation4 [shape = 's32[1]{0}', space=sflag, size = 0x4, scoped, tag = 'scoped memory for tpu_custom_call.1']
    #allocation5 [shape = 'u8[8192]{0}', space=vmem, size = 0x2000, scoped, tag = 'output window, operand 0, single buffered']
    %6 = vsyncpa [#allocation3], 0
    %7 = vsyncpa [#allocation4], 0
    // Predicated region
    $region2: #{tpu_custom_call.1} parent=1 // pred_check
      _
    $region3: #{tpu_custom_call.1} parent=1 // pred_check_branch
      %9 = sbr.rel (0) target = $region5
    $region4: #{tpu_custom_call.1} parent=1 // pred_region
      %s11 = ssub.s32 256, 256
      %12 = vsyncadd [#allocation3], %s11
      %s14 = sshll.u32 [#allocation2], 4
      %s15 = int_to_ptr.vmem [resolvable:$true] %s14
      %17 = dma.hbm_to_vmem [thread:$0]  %s0, 256, %s15, [#allocation3]
    $region5: #{tpu_custom_call.1} parent=1 // pred_fallthru
      _
    // Predicated region
    $region6: #{tpu_custom_call.1} parent=1 // pred_check
      _
    $region7: #{tpu_custom_call.1} parent=1 // pred_check_branch
      %19 = sbr.rel (0) target = $region9
    $region8: #{tpu_custom_call.1} parent=1 // pred_region
      %20 = dma.done [#allocation3], 256
    $region9: #{tpu_custom_call.1} parent=1 // pred_fallthru
      _
    %v21 = vld [vmem:[#allocation2] sm:$0xff]
    %v22 = vld [vmem:[#allocation2 + $0x8] sm:$0xff]
    %v23 = vmul.f32 %v21, 0.5
    %v24 = vmul.f32 %v22, 0.5
    %v25 = vtanh.pop %v23
    %v26 = vtanh.pop %v24
    %v27 = vmul.f32 %v25, 0.5
    %v28 = vmul.f32 %v26, 0.5
    %v29 = vadd.f32 %v27, 0.5
    %v30 = vadd.f32 %v28, 0.5
    %v31 = vmul.f32 %v21, %v29
    %v32 = vmul.f32 %v22, %v30
    %33 = vst [vmem:[#allocation5] sm:$0xff] %v31
    %34 = vst [vmem:[#allocation5 + $0x8] sm:$0xff] %v32
    // Predicated region
    $region10: #{tpu_custom_call.1} parent=1 // pred_check
      _
    $region11: #{tpu_custom_call.1} parent=1 // pred_check_branch
      %36 = sbr.rel (0) target = $region13
    $region12: #{tpu_custom_call.1} parent=1 // pred_region
      %s38 = ssub.s32 256, 256
      %39 = vsyncadd [#allocation4], %s38
      %s41 = sshll.u32 [#allocation5], 4
      %s42 = int_to_ptr.vmem [resolvable:$true] %s41
      %44 = dma.vmem_to_hbm [thread:$0]  %s42, 256, %s1, [#allocation4]
    $region13: #{tpu_custom_call.1} parent=1 // pred_fallthru
      _
    // Predicated region
    $region14: #{tpu_custom_call.1} parent=1 // pred_check
      _
    $region15: #{tpu_custom_call.1} parent=1 // pred_check_branch
      %46 = sbr.rel (0) target = $region17
    $region16: #{tpu_custom_call.1} parent=1 // pred_region
      %47 = dma.done [#allocation4], 256
    $region17: #{tpu_custom_call.1} parent=1 // pred_fallthru
      _
    %48 = vsyncpa [#allocation3], 1
    %49 = vsyncpa [#allocation4], 1

</llo_original>
